<compile_context>
chip_gen: v5e
topology: v5e:2x2
jax: 0.10.0
libtpu: 0.0.40
codegen_flags: <defaults>
</compile_context>

<pallas_src>
import functools

import jax
import jax.numpy as jnp
from jax import lax
from jax.experimental import pallas as pl
from jax.experimental.pallas import tpu as pltpu

KSIZE = 3  # conv kernel_size in the module (padding = KSIZE // 2 = 1)


def _spatial_attention_kernel(x_ref, idx_ref, w1_ref, wc_ref, b_ref, o_ref, *, H, W):
    # x_ref  : (NB, C, L) VMEM f32, L = H*W (lane-dense spatial layout)
    # idx_ref: (2, L)     VMEM int32 -- [row index, col index] per flat position
    # w1_ref : (C,)       SMEM -- 1x1 conv weights with BN1 folded in
    # wc_ref : (27,)      SMEM -- 3x3 conv weights with BN2 folded, flat (ci,kh,kw)
    # b_ref  : (2,)       SMEM -- [folded bias1, folded bias2]
    # o_ref  : (NB, L)    VMEM f32
    NB, C, L = x_ref.shape

    # ---- single fused pass over channels: 1x1 conv + channel sum + channel max
    x0 = x_ref[:, 0, :]
    y1 = w1_ref[0] * x0
    ssum = x0
    mmax = x0
    for c in range(1, C):
        xc = x_ref[:, c, :]
        y1 = y1 + w1_ref[c] * xc
        ssum = ssum + xc
        mmax = jnp.maximum(mmax, xc)
    z1 = y1 + b_ref[0]                 # BN1 already folded into weights/bias
    avg = ssum * (1.0 / C)
    feats = (z1, avg, mmax)

    # ---- boundary masks for the 9 conv taps (shared across the 3 feature maps)
    row = idx_ref[0:1, :]              # (1, L) int32
    col = idx_ref[1:2, :]
    h_ok = {-1: row >= 1, 0: None, 1: row < (H - 1)}
    w_ok = {-1: col >= 1, 0: None, 1: col < (W - 1)}

    def tap_mask(dh, dw):
        a, b = h_ok[dh], w_ok[dw]
        if a is None:
            return b
        if b is None:
            return a
        return a & b

    masks = {(dh, dw): tap_mask(dh, dw) for dh in (-1, 0, 1) for dw in (-1, 0, 1)}

    # ---- 3x3 conv (3 -> 1) as roll+mask shifted adds; independent per-channel
    #      accumulators break the 27-deep serial add chain.
    partial = []
    for ci in range(3):
        f = feats[ci]
        acc = None
        for kh in range(KSIZE):
            dh = kh - 1
            for kw in range(KSIZE):
                dw = kw - 1
                off = dh * W + dw
                wgt = wc_ref[ci * KSIZE * KSIZE + kh * KSIZE + kw]
                sh = f if off == 0 else pltpu.roll(f, (-off) % L, axis=1)
                mask = masks[(dh, dw)]
                if mask is not None:
                    sh = jnp.where(mask, sh, 0.0)
                term = wgt * sh
                acc = term if acc is None else acc + term
        partial.append(acc)

    conv = partial[0] + partial[1] + partial[2] + b_ref[1]
    o_ref[...] = jax.nn.sigmoid(conv)


def spatial_attention(x, w1, b1, bn1_params, wc, b2, bn2_params, *, eps=1e-5):
    """x: (N, C, H, W). Conv/BN params in torch shapes. BN in eval mode."""
    N, C, H, W = x.shape
    L = H * W

    g1, be1, m1, v1 = (jnp.reshape(t, ()) for t in bn1_params)
    g2, be2, m2, v2 = (jnp.reshape(t, ()) for t in bn2_params)
    b1s = jnp.reshape(b1, ())
    b2s = jnp.reshape(b2, ())

    # Fold BN (eval mode) into the conv weights / biases.
    s1 = g1 / jnp.sqrt(v1 + eps)
    t1 = be1 - m1 * s1
    s2 = g2 / jnp.sqrt(v2 + eps)
    t2 = be2 - m2 * s2
    w1f = (w1.reshape(C) * s1).astype(jnp.float32)
    wcf = (wc.reshape(-1) * s2).astype(jnp.float32)
    bias = jnp.stack([b1s * s1 + t1, b2s * s2 + t2]).astype(jnp.float32)

    # Batch block per grid step (sublanes); multiple of 8 when it tiles N.
    nb = N if N <= 32 else 32
    grid = (pl.cdiv(N, nb),)

    # Precomputed (row, col) indices for the conv boundary masks.
    ar = jnp.arange(L, dtype=jnp.int32)
    idx = jnp.stack([ar // W, ar % W])          # (2, L)

    xf = x.reshape(N, C, L).astype(jnp.float32)  # lane-dense spatial layout

    kernel = functools.partial(_spatial_attention_kernel, H=H, W=W)
    out_flat = pl.pallas_call(
        kernel,
        out_shape=jax.ShapeDtypeStruct((N, L), jnp.float32),
        grid=grid,
        in_specs=[
            pl.BlockSpec((nb, C, L), lambda n: (n, 0, 0)),
            pl.BlockSpec((2, L), lambda n: (0, 0)),
            pl.BlockSpec(memory_space=pltpu.MemorySpace.SMEM),
            pl.BlockSpec(memory_space=pltpu.MemorySpace.SMEM),
            pl.BlockSpec(memory_space=pltpu.MemorySpace.SMEM),
        ],
        out_specs=pl.BlockSpec((nb, L), lambda n: (n, 0)),
        compiler_params=pltpu.CompilerParams(
            dimension_semantics=("parallel",)),
    )(xf, idx, w1f, wcf, bias)
    return out_flat.reshape(N, 1, H, W)


if __name__ == "__main__":
    key = jax.random.PRNGKey(0)
    N, C, H, W = 2, 4, 16, 16
    ks = jax.random.split(key, 11)

    x = jax.random.normal(ks[0], (N, C, H, W), jnp.float32)

    # Module parameters (torch shapes); BN in inference mode with running stats.
    w1 = 0.3 * jax.random.normal(ks[1], (1, C, 1, 1), jnp.float32)
    b1 = 0.1 * jax.random.normal(ks[2], (1,), jnp.float32)
    g1 = 1.0 + 0.1 * jax.random.normal(ks[3], (1,), jnp.float32)
    be1 = 0.1 * jax.random.normal(ks[4], (1,), jnp.float32)
    m1 = 0.1 * jax.random.normal(ks[5], (1,), jnp.float32)
    v1 = 1.0 + 0.1 * jnp.abs(jax.random.normal(ks[6], (1,), jnp.float32))
    wc = 0.2 * jax.random.normal(ks[7], (1, 3, KSIZE, KSIZE), jnp.float32)
    b2 = 0.1 * jax.random.normal(ks[8], (1,), jnp.float32)
    g2 = 1.0 + 0.1 * jax.random.normal(ks[9], (1,), jnp.float32)
    be2 = 0.1 * jax.random.normal(ks[10], (1,), jnp.float32)
    m2 = jnp.full((1,), 0.05, jnp.float32)
    v2 = jnp.full((1,), 1.1, jnp.float32)
    eps = 1e-5
    # TODO(synk): PyTorch BatchNorm2d in .train() mode would use batch
    # statistics; here BN is implemented in eval mode with running stats.

    out = jax.block_until_ready(
        spatial_attention(x, w1, b1, (g1, be1, m1, v1),
                          wc, b2, (g2, be2, m2, v2), eps=eps))

    # --- pure-JAX reference (BN eval mode), mirrors the PyTorch forward ---
    def reference(x):
        y1 = lax.conv_general_dilated(
            x, w1, (1, 1), "VALID",
            dimension_numbers=("NCHW", "OIHW", "NCHW")) + b1.reshape(1, 1, 1, 1)
        z1 = (y1 - m1) / jnp.sqrt(v1 + eps) * g1 + be1
        avg = jnp.mean(x, axis=1, keepdims=True)
        mx = jnp.max(x, axis=1, keepdims=True)
        feat = jnp.concatenate([z1, avg, mx], axis=1)
        conv = lax.conv_general_dilated(
            feat, wc, (1, 1), "SAME",
            dimension_numbers=("NCHW", "OIHW", "NCHW")) + b2.reshape(1, 1, 1, 1)
        z2 = (conv - m2) / jnp.sqrt(v2 + eps) * g2 + be2
        return jax.nn.sigmoid(z2)

    ref = reference(x)
    assert out.shape == (N, 1, H, W), out.shape
    assert jnp.allclose(out, ref, atol=1e-5, rtol=1e-5), (
        float(jnp.max(jnp.abs(out - ref))))
    print("KERNEL_OK")
</pallas_src>

<mosaic_0001>
module attributes {stable_mosaic.version = 11 : i64} {
  func.func @_spatial_attention_kernel(%arg0: i32, %arg1: memref<2x4x256xf32, #tpu.memory_space<vmem>>, %arg2: memref<2x256xi32, #tpu.memory_space<vmem>>, %arg3: memref<4xf32, #tpu.memory_space<smem>>, %arg4: memref<27xf32, #tpu.memory_space<smem>>, %arg5: memref<2xf32, #tpu.memory_space<smem>>, %arg6: memref<2x256xf32, #tpu.memory_space<vmem>>) attributes {dimension_semantics = [#tpu.dimension_semantics<parallel>], iteration_bounds = array<i64: 1>, scalar_prefetch = 0 : i64, scratch_operands = 0 : i64, tpu.core_type = #tpu.core_type<tc>, window_params = [{transform_indices = @transform_0, window_bounds = array<i64: 2, 4, 256>}, {pipeline_mode = #tpu.pipeline_mode<synchronous>, transform_indices = @transform_1, window_bounds = array<i64: 2, 256>}, {transform_indices = @transform_2, window_bounds = array<i64: 4>}, {transform_indices = @transform_3, window_bounds = array<i64: 27>}, {transform_indices = @transform_4, window_bounds = array<i64: 2>}, {transform_indices = @transform_5, window_bounds = array<i64: 2, 256>}]} {
    %c0 = arith.constant 0 : index
    %c0_0 = arith.constant 0 : index
    %c0_1 = arith.constant 0 : index
    %0 = vector.load %arg1[%c0, %c0_0, %c0_1] : memref<2x4x256xf32, #tpu.memory_space<vmem>>, vector<2x1x256xf32>
    %1 = vector.shape_cast %0 : vector<2x1x256xf32> to vector<2x256xf32>
    %c0_2 = arith.constant 0 : index
    %2 = memref.load %arg3[%c0_2] : memref<4xf32, #tpu.memory_space<smem>>
    %3 = vector.broadcast %2 : f32 to vector<2x256xf32>
    %4 = arith.mulf %3, %1 : vector<2x256xf32>
    %c0_3 = arith.constant 0 : index
    %c1 = arith.constant 1 : index
    %c0_4 = arith.constant 0 : index
    %5 = vector.load %arg1[%c0_3, %c1, %c0_4] : memref<2x4x256xf32, #tpu.memory_space<vmem>>, vector<2x1x256xf32>
    %6 = vector.shape_cast %5 : vector<2x1x256xf32> to vector<2x256xf32>
    %c1_5 = arith.constant 1 : index
    %7 = memref.load %arg3[%c1_5] : memref<4xf32, #tpu.memory_space<smem>>
    %8 = vector.broadcast %7 : f32 to vector<2x256xf32>
    %9 = arith.mulf %8, %6 : vector<2x256xf32>
    %10 = arith.addf %4, %9 : vector<2x256xf32>
    %11 = arith.addf %1, %6 : vector<2x256xf32>
    %12 = arith.maximumf %1, %6 : vector<2x256xf32>
    %c0_6 = arith.constant 0 : index
    %c2 = arith.constant 2 : index
    %c0_7 = arith.constant 0 : index
    %13 = vector.load %arg1[%c0_6, %c2, %c0_7] : memref<2x4x256xf32, #tpu.memory_space<vmem>>, vector<2x1x256xf32>
    %14 = vector.shape_cast %13 : vector<2x1x256xf32> to vector<2x256xf32>
    %c2_8 = arith.constant 2 : index
    %15 = memref.load %arg3[%c2_8] : memref<4xf32, #tpu.memory_space<smem>>
    %16 = vector.broadcast %15 : f32 to vector<2x256xf32>
    %17 = arith.mulf %16, %14 : vector<2x256xf32>
    %18 = arith.addf %10, %17 : vector<2x256xf32>
    %19 = arith.addf %11, %14 : vector<2x256xf32>
    %20 = arith.maximumf %12, %14 : vector<2x256xf32>
    %c0_9 = arith.constant 0 : index
    %c3 = arith.constant 3 : index
    %c0_10 = arith.constant 0 : index
    %21 = vector.load %arg1[%c0_9, %c3, %c0_10] : memref<2x4x256xf32, #tpu.memory_space<vmem>>, vector<2x1x256xf32>
    %22 = vector.shape_cast %21 : vector<2x1x256xf32> to vector<2x256xf32>
    %c3_11 = arith.constant 3 : index
    %23 = memref.load %arg3[%c3_11] : memref<4xf32, #tpu.memory_space<smem>>
    %24 = vector.broadcast %23 : f32 to vector<2x256xf32>
    %25 = arith.mulf %24, %22 : vector<2x256xf32>
    %26 = arith.addf %18, %25 : vector<2x256xf32>
    %27 = arith.addf %19, %22 : vector<2x256xf32>
    %28 = arith.maximumf %20, %22 : vector<2x256xf32>
    %c0_12 = arith.constant 0 : index
    %29 = memref.load %arg5[%c0_12] : memref<2xf32, #tpu.memory_space<smem>>
    %30 = vector.broadcast %29 : f32 to vector<2x256xf32>
    %31 = arith.addf %26, %30 : vector<2x256xf32>
    %cst = arith.constant 2.500000e-01 : f32
    %32 = vector.broadcast %cst : f32 to vector<2x256xf32>
    %33 = arith.mulf %27, %32 : vector<2x256xf32>
    %c0_13 = arith.constant 0 : index
    %c0_14 = arith.constant 0 : index
    %34 = vector.load %arg2[%c0_13, %c0_14] : memref<2x256xi32, #tpu.memory_space<vmem>>, vector<1x256xi32>
    %c1_15 = arith.constant 1 : index
    %c0_16 = arith.constant 0 : index
    %35 = vector.load %arg2[%c1_15, %c0_16] : memref<2x256xi32, #tpu.memory_space<vmem>>, vector<1x256xi32>
    %c1_i32 = arith.constant 1 : i32
    %36 = vector.broadcast %c1_i32 : i32 to vector<1x256xi32>
    %37 = arith.cmpi sge, %34, %36 : vector<1x256xi32>
    %c15_i32 = arith.constant 15 : i32
    %38 = vector.broadcast %c15_i32 : i32 to vector<1x256xi32>
    %39 = arith.cmpi slt, %34, %38 : vector<1x256xi32>
    %c1_i32_17 = arith.constant 1 : i32
    %40 = vector.broadcast %c1_i32_17 : i32 to vector<1x256xi32>
    %41 = arith.cmpi sge, %35, %40 : vector<1x256xi32>
    %c15_i32_18 = arith.constant 15 : i32
    %42 = vector.broadcast %c15_i32_18 : i32 to vector<1x256xi32>
    %43 = arith.cmpi slt, %35, %42 : vector<1x256xi32>
    %44 = arith.andi %37, %41 : vector<1x256xi1>
    %45 = arith.andi %37, %43 : vector<1x256xi1>
    %46 = arith.andi %39, %41 : vector<1x256xi1>
    %47 = arith.andi %39, %43 : vector<1x256xi1>
    %c0_19 = arith.constant 0 : index
    %48 = memref.load %arg4[%c0_19] : memref<27xf32, #tpu.memory_space<smem>>
    %c17_i32 = arith.constant 17 : i32
    %49 = tpu.dynamic_rotate %31 by %c17_i32 dim 1 : vector<2x256xf32>, i32 -> vector<2x256xf32>
    %cst_20 = arith.constant 0.000000e+00 : f32
    %50 = vector.shape_cast %44 : vector<1x256xi1> to vector<1x256xi1>
    %51 = vector.broadcast %50 : vector<1x256xi1> to vector<2x256xi1>
    %52 = vector.broadcast %cst_20 : f32 to vector<2x256xf32>
    %53 = arith.select %51, %49, %52 : vector<2x256xi1>, vector<2x256xf32>
    %54 = vector.broadcast %48 : f32 to vector<2x256xf32>
    %55 = arith.mulf %54, %53 : vector<2x256xf32>
    %c1_21 = arith.constant 1 : index
    %56 = memref.load %arg4[%c1_21] : memref<27xf32, #tpu.memory_space<smem>>
    %c16_i32 = arith.constant 16 : i32
    %57 = tpu.dynamic_rotate %31 by %c16_i32 dim 1 : vector<2x256xf32>, i32 -> vector<2x256xf32>
    %cst_22 = arith.constant 0.000000e+00 : f32
    %58 = vector.shape_cast %37 : vector<1x256xi1> to vector<1x256xi1>
    %59 = vector.broadcast %58 : vector<1x256xi1> to vector<2x256xi1>
    %60 = vector.broadcast %cst_22 : f32 to vector<2x256xf32>
    %61 = arith.select %59, %57, %60 : vector<2x256xi1>, vector<2x256xf32>
    %62 = vector.broadcast %56 : f32 to vector<2x256xf32>
    %63 = arith.mulf %62, %61 : vector<2x256xf32>
    %64 = arith.addf %55, %63 : vector<2x256xf32>
    %c2_23 = arith.constant 2 : index
    %65 = memref.load %arg4[%c2_23] : memref<27xf32, #tpu.memory_space<smem>>
    %c15_i32_24 = arith.constant 15 : i32
    %66 = tpu.dynamic_rotate %31 by %c15_i32_24 dim 1 : vector<2x256xf32>, i32 -> vector<2x256xf32>
    %cst_25 = arith.constant 0.000000e+00 : f32
    %67 = vector.shape_cast %45 : vector<1x256xi1> to vector<1x256xi1>
    %68 = vector.broadcast %67 : vector<1x256xi1> to vector<2x256xi1>
    %69 = vector.broadcast %cst_25 : f32 to vector<2x256xf32>
    %70 = arith.select %68, %66, %69 : vector<2x256xi1>, vector<2x256xf32>
    %71 = vector.broadcast %65 : f32 to vector<2x256xf32>
    %72 = arith.mulf %71, %70 : vector<2x256xf32>
    %73 = arith.addf %64, %72 : vector<2x256xf32>
    %c3_26 = arith.constant 3 : index
    %74 = memref.load %arg4[%c3_26] : memref<27xf32, #tpu.memory_space<smem>>
    %c1_i32_27 = arith.constant 1 : i32
    %75 = tpu.dynamic_rotate %31 by %c1_i32_27 dim 1 : vector<2x256xf32>, i32 -> vector<2x256xf32>
    %cst_28 = arith.constant 0.000000e+00 : f32
    %76 = vector.shape_cast %41 : vector<1x256xi1> to vector<1x256xi1>
    %77 = vector.broadcast %76 : vector<1x256xi1> to vector<2x256xi1>
    %78 = vector.broadcast %cst_28 : f32 to vector<2x256xf32>
    %79 = arith.select %77, %75, %78 : vector<2x256xi1>, vector<2x256xf32>
    %80 = vector.broadcast %74 : f32 to vector<2x256xf32>
    %81 = arith.mulf %80, %79 : vector<2x256xf32>
    %82 = arith.addf %73, %81 : vector<2x256xf32>
    %c4 = arith.constant 4 : index
    %83 = memref.load %arg4[%c4] : memref<27xf32, #tpu.memory_space<smem>>
    %84 = vector.broadcast %83 : f32 to vector<2x256xf32>
    %85 = arith.mulf %84, %31 : vector<2x256xf32>
    %86 = arith.addf %82, %85 : vector<2x256xf32>
    %c5 = arith.constant 5 : index
    %87 = memref.load %arg4[%c5] : memref<27xf32, #tpu.memory_space<smem>>
    %c255_i32 = arith.constant 255 : i32
    %88 = tpu.dynamic_rotate %31 by %c255_i32 dim 1 : vector<2x256xf32>, i32 -> vector<2x256xf32>
    %cst_29 = arith.constant 0.000000e+00 : f32
    %89 = vector.shape_cast %43 : vector<1x256xi1> to vector<1x256xi1>
    %90 = vector.broadcast %89 : vector<1x256xi1> to vector<2x256xi1>
    %91 = vector.broadcast %cst_29 : f32 to vector<2x256xf32>
    %92 = arith.select %90, %88, %91 : vector<2x256xi1>, vector<2x256xf32>
    %93 = vector.broadcast %87 : f32 to vector<2x256xf32>
    %94 = arith.mulf %93, %92 : vector<2x256xf32>
    %95 = arith.addf %86, %94 : vector<2x256xf32>
    %c6 = arith.constant 6 : index
    %96 = memref.load %arg4[%c6] : memref<27xf32, #tpu.memory_space<smem>>
    %c241_i32 = arith.constant 241 : i32
    %97 = tpu.dynamic_rotate %31 by %c241_i32 dim 1 : vector<2x256xf32>, i32 -> vector<2x256xf32>
    %cst_30 = arith.constant 0.000000e+00 : f32
    %98 = vector.shape_cast %46 : vector<1x256xi1> to vector<1x256xi1>
    %99 = vector.broadcast %98 : vector<1x256xi1> to vector<2x256xi1>
    %100 = vector.broadcast %cst_30 : f32 to vector<2x256xf32>
    %101 = arith.select %99, %97, %100 : vector<2x256xi1>, vector<2x256xf32>
    %102 = vector.broadcast %96 : f32 to vector<2x256xf32>
    %103 = arith.mulf %102, %101 : vector<2x256xf32>
    %104 = arith.addf %95, %103 : vector<2x256xf32>
    %c7 = arith.constant 7 : index
    %105 = memref.load %arg4[%c7] : memref<27xf32, #tpu.memory_space<smem>>
    %c240_i32 = arith.constant 240 : i32
    %106 = tpu.dynamic_rotate %31 by %c240_i32 dim 1 : vector<2x256xf32>, i32 -> vector<2x256xf32>
    %cst_31 = arith.constant 0.000000e+00 : f32
    %107 = vector.shape_cast %39 : vector<1x256xi1> to vector<1x256xi1>
    %108 = vector.broadcast %107 : vector<1x256xi1> to vector<2x256xi1>
    %109 = vector.broadcast %cst_31 : f32 to vector<2x256xf32>
    %110 = arith.select %108, %106, %109 : vector<2x256xi1>, vector<2x256xf32>
    %111 = vector.broadcast %105 : f32 to vector<2x256xf32>
    %112 = arith.mulf %111, %110 : vector<2x256xf32>
    %113 = arith.addf %104, %112 : vector<2x256xf32>
    %c8 = arith.constant 8 : index
    %114 = memref.load %arg4[%c8] : memref<27xf32, #tpu.memory_space<smem>>
    %c239_i32 = arith.constant 239 : i32
    %115 = tpu.dynamic_rotate %31 by %c239_i32 dim 1 : vector<2x256xf32>, i32 -> vector<2x256xf32>
    %cst_32 = arith.constant 0.000000e+00 : f32
    %116 = vector.shape_cast %47 : vector<1x256xi1> to vector<1x256xi1>
    %117 = vector.broadcast %116 : vector<1x256xi1> to vector<2x256xi1>
    %118 = vector.broadcast %cst_32 : f32 to vector<2x256xf32>
    %119 = arith.select %117, %115, %118 : vector<2x256xi1>, vector<2x256xf32>
    %120 = vector.broadcast %114 : f32 to vector<2x256xf32>
    %121 = arith.mulf %120, %119 : vector<2x256xf32>
    %122 = arith.addf %113, %121 : vector<2x256xf32>
    %c9 = arith.constant 9 : index
    %123 = memref.load %arg4[%c9] : memref<27xf32, #tpu.memory_space<smem>>
    %c17_i32_33 = arith.constant 17 : i32
    %124 = tpu.dynamic_rotate %33 by %c17_i32_33 dim 1 : vector<2x256xf32>, i32 -> vector<2x256xf32>
    %cst_34 = arith.constant 0.000000e+00 : f32
    %125 = vector.shape_cast %44 : vector<1x256xi1> to vector<1x256xi1>
    %126 = vector.broadcast %125 : vector<1x256xi1> to vector<2x256xi1>
    %127 = vector.broadcast %cst_34 : f32 to vector<2x256xf32>
    %128 = arith.select %126, %124, %127 : vector<2x256xi1>, vector<2x256xf32>
    %129 = vector.broadcast %123 : f32 to vector<2x256xf32>
    %130 = arith.mulf %129, %128 : vector<2x256xf32>
    %c10 = arith.constant 10 : index
    %131 = memref.load %arg4[%c10] : memref<27xf32, #tpu.memory_space<smem>>
    %c16_i32_35 = arith.constant 16 : i32
    %132 = tpu.dynamic_rotate %33 by %c16_i32_35 dim 1 : vector<2x256xf32>, i32 -> vector<2x256xf32>
    %cst_36 = arith.constant 0.000000e+00 : f32
    %133 = vector.shape_cast %37 : vector<1x256xi1> to vector<1x256xi1>
    %134 = vector.broadcast %133 : vector<1x256xi1> to vector<2x256xi1>
    %135 = vector.broadcast %cst_36 : f32 to vector<2x256xf32>
    %136 = arith.select %134, %132, %135 : vector<2x256xi1>, vector<2x256xf32>
    %137 = vector.broadcast %131 : f32 to vector<2x256xf32>
    %138 = arith.mulf %137, %136 : vector<2x256xf32>
    %139 = arith.addf %130, %138 : vector<2x256xf32>
    %c11 = arith.constant 11 : index
    %140 = memref.load %arg4[%c11] : memref<27xf32, #tpu.memory_space<smem>>
    %c15_i32_37 = arith.constant 15 : i32
    %141 = tpu.dynamic_rotate %33 by %c15_i32_37 dim 1 : vector<2x256xf32>, i32 -> vector<2x256xf32>
    %cst_38 = arith.constant 0.000000e+00 : f32
    %142 = vector.shape_cast %45 : vector<1x256xi1> to vector<1x256xi1>
    %143 = vector.broadcast %142 : vector<1x256xi1> to vector<2x256xi1>
    %144 = vector.broadcast %cst_38 : f32 to vector<2x256xf32>
    %145 = arith.select %143, %141, %144 : vector<2x256xi1>, vector<2x256xf32>
    %146 = vector.broadcast %140 : f32 to vector<2x256xf32>
    %147 = arith.mulf %146, %145 : vector<2x256xf32>
    %148 = arith.addf %139, %147 : vector<2x256xf32>
    %c12 = arith.constant 12 : index
    %149 = memref.load %arg4[%c12] : memref<27xf32, #tpu.memory_space<smem>>
    %c1_i32_39 = arith.constant 1 : i32
    %150 = tpu.dynamic_rotate %33 by %c1_i32_39 dim 1 : vector<2x256xf32>, i32 -> vector<2x256xf32>
    %cst_40 = arith.constant 0.000000e+00 : f32
    %151 = vector.shape_cast %41 : vector<1x256xi1> to vector<1x256xi1>
    %152 = vector.broadcast %151 : vector<1x256xi1> to vector<2x256xi1>
    %153 = vector.broadcast %cst_40 : f32 to vector<2x256xf32>
    %154 = arith.select %152, %150, %153 : vector<2x256xi1>, vector<2x256xf32>
    %155 = vector.broadcast %149 : f32 to vector<2x256xf32>
    %156 = arith.mulf %155, %154 : vector<2x256xf32>
    %157 = arith.addf %148, %156 : vector<2x256xf32>
    %c13 = arith.constant 13 : index
    %158 = memref.load %arg4[%c13] : memref<27xf32, #tpu.memory_space<smem>>
    %159 = vector.broadcast %158 : f32 to vector<2x256xf32>
    %160 = arith.mulf %159, %33 : vector<2x256xf32>
    %161 = arith.addf %157, %160 : vector<2x256xf32>
    %c14 = arith.constant 14 : index
    %162 = memref.load %arg4[%c14] : memref<27xf32, #tpu.memory_space<smem>>
    %c255_i32_41 = arith.constant 255 : i32
    %163 = tpu.dynamic_rotate %33 by %c255_i32_41 dim 1 : vector<2x256xf32>, i32 -> vector<2x256xf32>
    %cst_42 = arith.constant 0.000000e+00 : f32
    %164 = vector.shape_cast %43 : vector<1x256xi1> to vector<1x256xi1>
    %165 = vector.broadcast %164 : vector<1x256xi1> to vector<2x256xi1>
    %166 = vector.broadcast %cst_42 : f32 to vector<2x256xf32>
    %167 = arith.select %165, %163, %166 : vector<2x256xi1>, vector<2x256xf32>
    %168 = vector.broadcast %162 : f32 to vector<2x256xf32>
    %169 = arith.mulf %168, %167 : vector<2x256xf32>
    %170 = arith.addf %161, %169 : vector<2x256xf32>
    %c15 = arith.constant 15 : index
    %171 = memref.load %arg4[%c15] : memref<27xf32, #tpu.memory_space<smem>>
    %c241_i32_43 = arith.constant 241 : i32
    %172 = tpu.dynamic_rotate %33 by %c241_i32_43 dim 1 : vector<2x256xf32>, i32 -> vector<2x256xf32>
    %cst_44 = arith.constant 0.000000e+00 : f32
    %173 = vector.shape_cast %46 : vector<1x256xi1> to vector<1x256xi1>
    %174 = vector.broadcast %173 : vector<1x256xi1> to vector<2x256xi1>
    %175 = vector.broadcast %cst_44 : f32 to vector<2x256xf32>
    %176 = arith.select %174, %172, %175 : vector<2x256xi1>, vector<2x256xf32>
    %177 = vector.broadcast %171 : f32 to vector<2x256xf32>
    %178 = arith.mulf %177, %176 : vector<2x256xf32>
    %179 = arith.addf %170, %178 : vector<2x256xf32>
    %c16 = arith.constant 16 : index
    %180 = memref.load %arg4[%c16] : memref<27xf32, #tpu.memory_space<smem>>
    %c240_i32_45 = arith.constant 240 : i32
    %181 = tpu.dynamic_rotate %33 by %c240_i32_45 dim 1 : vector<2x256xf32>, i32 -> vector<2x256xf32>
    %cst_46 = arith.constant 0.000000e+00 : f32
    %182 = vector.shape_cast %39 : vector<1x256xi1> to vector<1x256xi1>
    %183 = vector.broadcast %182 : vector<1x256xi1> to vector<2x256xi1>
    %184 = vector.broadcast %cst_46 : f32 to vector<2x256xf32>
    %185 = arith.select %183, %181, %184 : vector<2x256xi1>, vector<2x256xf32>
    %186 = vector.broadcast %180 : f32 to vector<2x256xf32>
    %187 = arith.mulf %186, %185 : vector<2x256xf32>
    %188 = arith.addf %179, %187 : vector<2x256xf32>
    %c17 = arith.constant 17 : index
    %189 = memref.load %arg4[%c17] : memref<27xf32, #tpu.memory_space<smem>>
    %c239_i32_47 = arith.constant 239 : i32
    %190 = tpu.dynamic_rotate %33 by %c239_i32_47 dim 1 : vector<2x256xf32>, i32 -> vector<2x256xf32>
    %cst_48 = arith.constant 0.000000e+00 : f32
    %191 = vector.shape_cast %47 : vector<1x256xi1> to vector<1x256xi1>
    %192 = vector.broadcast %191 : vector<1x256xi1> to vector<2x256xi1>
    %193 = vector.broadcast %cst_48 : f32 to vector<2x256xf32>
    %194 = arith.select %192, %190, %193 : vector<2x256xi1>, vector<2x256xf32>
    %195 = vector.broadcast %189 : f32 to vector<2x256xf32>
    %196 = arith.mulf %195, %194 : vector<2x256xf32>
    %197 = arith.addf %188, %196 : vector<2x256xf32>
    %c18 = arith.constant 18 : index
    %198 = memref.load %arg4[%c18] : memref<27xf32, #tpu.memory_space<smem>>
    %c17_i32_49 = arith.constant 17 : i32
    %199 = tpu.dynamic_rotate %28 by %c17_i32_49 dim 1 : vector<2x256xf32>, i32 -> vector<2x256xf32>
    %cst_50 = arith.constant 0.000000e+00 : f32
    %200 = vector.shape_cast %44 : vector<1x256xi1> to vector<1x256xi1>
    %201 = vector.broadcast %200 : vector<1x256xi1> to vector<2x256xi1>
    %202 = vector.broadcast %cst_50 : f32 to vector<2x256xf32>
    %203 = arith.select %201, %199, %202 : vector<2x256xi1>, vector<2x256xf32>
    %204 = vector.broadcast %198 : f32 to vector<2x256xf32>
    %205 = arith.mulf %204, %203 : vector<2x256xf32>
    %c19 = arith.constant 19 : index
    %206 = memref.load %arg4[%c19] : memref<27xf32, #tpu.memory_space<smem>>
    %c16_i32_51 = arith.constant 16 : i32
    %207 = tpu.dynamic_rotate %28 by %c16_i32_51 dim 1 : vector<2x256xf32>, i32 -> vector<2x256xf32>
    %cst_52 = arith.constant 0.000000e+00 : f32
    %208 = vector.shape_cast %37 : vector<1x256xi1> to vector<1x256xi1>
    %209 = vector.broadcast %208 : vector<1x256xi1> to vector<2x256xi1>
    %210 = vector.broadcast %cst_52 : f32 to vector<2x256xf32>
    %211 = arith.select %209, %207, %210 : vector<2x256xi1>, vector<2x256xf32>
    %212 = vector.broadcast %206 : f32 to vector<2x256xf32>
    %213 = arith.mulf %212, %211 : vector<2x256xf32>
    %214 = arith.addf %205, %213 : vector<2x256xf32>
    %c20 = arith.constant 20 : index
    %215 = memref.load %arg4[%c20] : memref<27xf32, #tpu.memory_space<smem>>
    %c15_i32_53 = arith.constant 15 : i32
    %216 = tpu.dynamic_rotate %28 by %c15_i32_53 dim 1 : vector<2x256xf32>, i32 -> vector<2x256xf32>
    %cst_54 = arith.constant 0.000000e+00 : f32
    %217 = vector.shape_cast %45 : vector<1x256xi1> to vector<1x256xi1>
    %218 = vector.broadcast %217 : vector<1x256xi1> to vector<2x256xi1>
    %219 = vector.broadcast %cst_54 : f32 to vector<2x256xf32>
    %220 = arith.select %218, %216, %219 : vector<2x256xi1>, vector<2x256xf32>
    %221 = vector.broadcast %215 : f32 to vector<2x256xf32>
    %222 = arith.mulf %221, %220 : vector<2x256xf32>
    %223 = arith.addf %214, %222 : vector<2x256xf32>
    %c21 = arith.constant 21 : index
    %224 = memref.load %arg4[%c21] : memref<27xf32, #tpu.memory_space<smem>>
    %c1_i32_55 = arith.constant 1 : i32
    %225 = tpu.dynamic_rotate %28 by %c1_i32_55 dim 1 : vector<2x256xf32>, i32 -> vector<2x256xf32>
    %cst_56 = arith.constant 0.000000e+00 : f32
    %226 = vector.shape_cast %41 : vector<1x256xi1> to vector<1x256xi1>
    %227 = vector.broadcast %226 : vector<1x256xi1> to vector<2x256xi1>
    %228 = vector.broadcast %cst_56 : f32 to vector<2x256xf32>
    %229 = arith.select %227, %225, %228 : vector<2x256xi1>, vector<2x256xf32>
    %230 = vector.broadcast %224 : f32 to vector<2x256xf32>
    %231 = arith.mulf %230, %229 : vector<2x256xf32>
    %232 = arith.addf %223, %231 : vector<2x256xf32>
    %c22 = arith.constant 22 : index
    %233 = memref.load %arg4[%c22] : memref<27xf32, #tpu.memory_space<smem>>
    %234 = vector.broadcast %233 : f32 to vector<2x256xf32>
    %235 = arith.mulf %234, %28 : vector<2x256xf32>
    %236 = arith.addf %232, %235 : vector<2x256xf32>
    %c23 = arith.constant 23 : index
    %237 = memref.load %arg4[%c23] : memref<27xf32, #tpu.memory_space<smem>>
    %c255_i32_57 = arith.constant 255 : i32
    %238 = tpu.dynamic_rotate %28 by %c255_i32_57 dim 1 : vector<2x256xf32>, i32 -> vector<2x256xf32>
    %cst_58 = arith.constant 0.000000e+00 : f32
    %239 = vector.shape_cast %43 : vector<1x256xi1> to vector<1x256xi1>
    %240 = vector.broadcast %239 : vector<1x256xi1> to vector<2x256xi1>
    %241 = vector.broadcast %cst_58 : f32 to vector<2x256xf32>
    %242 = arith.select %240, %238, %241 : vector<2x256xi1>, vector<2x256xf32>
    %243 = vector.broadcast %237 : f32 to vector<2x256xf32>
    %244 = arith.mulf %243, %242 : vector<2x256xf32>
    %245 = arith.addf %236, %244 : vector<2x256xf32>
    %c24 = arith.constant 24 : index
    %246 = memref.load %arg4[%c24] : memref<27xf32, #tpu.memory_space<smem>>
    %c241_i32_59 = arith.constant 241 : i32
    %247 = tpu.dynamic_rotate %28 by %c241_i32_59 dim 1 : vector<2x256xf32>, i32 -> vector<2x256xf32>
    %cst_60 = arith.constant 0.000000e+00 : f32
    %248 = vector.shape_cast %46 : vector<1x256xi1> to vector<1x256xi1>
    %249 = vector.broadcast %248 : vector<1x256xi1> to vector<2x256xi1>
    %250 = vector.broadcast %cst_60 : f32 to vector<2x256xf32>
    %251 = arith.select %249, %247, %250 : vector<2x256xi1>, vector<2x256xf32>
    %252 = vector.broadcast %246 : f32 to vector<2x256xf32>
    %253 = arith.mulf %252, %251 : vector<2x256xf32>
    %254 = arith.addf %245, %253 : vector<2x256xf32>
    %c25 = arith.constant 25 : index
    %255 = memref.load %arg4[%c25] : memref<27xf32, #tpu.memory_space<smem>>
    %c240_i32_61 = arith.constant 240 : i32
    %256 = tpu.dynamic_rotate %28 by %c240_i32_61 dim 1 : vector<2x256xf32>, i32 -> vector<2x256xf32>
    %cst_62 = arith.constant 0.000000e+00 : f32
    %257 = vector.shape_cast %39 : vector<1x256xi1> to vector<1x256xi1>
    %258 = vector.broadcast %257 : vector<1x256xi1> to vector<2x256xi1>
    %259 = vector.broadcast %cst_62 : f32 to vector<2x256xf32>
    %260 = arith.select %258, %256, %259 : vector<2x256xi1>, vector<2x256xf32>
    %261 = vector.broadcast %255 : f32 to vector<2x256xf32>
    %262 = arith.mulf %261, %260 : vector<2x256xf32>
    %263 = arith.addf %254, %262 : vector<2x256xf32>
    %c26 = arith.constant 26 : index
    %264 = memref.load %arg4[%c26] : memref<27xf32, #tpu.memory_space<smem>>
    %c239_i32_63 = arith.constant 239 : i32
    %265 = tpu.dynamic_rotate %28 by %c239_i32_63 dim 1 : vector<2x256xf32>, i32 -> vector<2x256xf32>
    %cst_64 = arith.constant 0.000000e+00 : f32
    %266 = vector.shape_cast %47 : vector<1x256xi1> to vector<1x256xi1>
    %267 = vector.broadcast %266 : vector<1x256xi1> to vector<2x256xi1>
    %268 = vector.broadcast %cst_64 : f32 to vector<2x256xf32>
    %269 = arith.select %267, %265, %268 : vector<2x256xi1>, vector<2x256xf32>
    %270 = vector.broadcast %264 : f32 to vector<2x256xf32>
    %271 = arith.mulf %270, %269 : vector<2x256xf32>
    %272 = arith.addf %263, %271 : vector<2x256xf32>
    %273 = arith.addf %122, %197 : vector<2x256xf32>
    %274 = arith.addf %273, %272 : vector<2x256xf32>
    %c1_65 = arith.constant 1 : index
    %275 = memref.load %arg5[%c1_65] : memref<2xf32, #tpu.memory_space<smem>>
    %276 = vector.broadcast %275 : f32 to vector<2x256xf32>
    %277 = arith.addf %274, %276 : vector<2x256xf32>
    %278 = arith.negf %277 : vector<2x256xf32>
    %279 = math.exp %278 : vector<2x256xf32>
    %cst_66 = arith.constant 1.000000e+00 : f32
    %280 = vector.broadcast %cst_66 : f32 to vector<2x256xf32>
    %281 = arith.addf %280, %279 : vector<2x256xf32>
    %282 = arith.divf %280, %281 : vector<2x256xf32>
    %c0_67 = arith.constant 0 : index
    %c0_68 = arith.constant 0 : index
    %283 = vector.load %arg6[%c0_67, %c0_68] : memref<2x256xf32, #tpu.memory_space<vmem>>, vector<2x256xf32>
    tpu.vector_store %arg6[%c0_67, %c0_68], %282 {strides = array<i32>} : memref<2x256xf32, #tpu.memory_space<vmem>>, vector<2x256xf32>,
    return
  }
  func.func @transform_0(%arg0: i32) -> (i32, i32, i32) {
    %c0_i32 = arith.constant 0 : i32
    %c0_i32_0 = arith.constant 0 : i32
    %c0_i32_1 = arith.constant 0 : i32
    return %arg0, %c0_i32, %c0_i32_0 : i32, i32, i32
  }
  func.func @transform_1(%arg0: i32) -> (i32, i32) {
    %c0_i32 = arith.constant 0 : i32
    %c0_i32_0 = arith.constant 0 : i32
    %c0_i32_1 = arith.constant 0 : i32
    return %c0_i32, %c0_i32_0 : i32, i32
  }
  func.func @transform_2(%arg0: i32) -> i32 {
    %c0_i32 = arith.constant 0 : i32
    %c0_i32_0 = arith.constant 0 : i32
    return %c0_i32 : i32
  }
  func.func @transform_3(%arg0: i32) -> i32 {
    %c0_i32 = arith.constant 0 : i32
    %c0_i32_0 = arith.constant 0 : i32
    return %c0_i32 : i32
  }
  func.func @transform_4(%arg0: i32) -> i32 {
    %c0_i32 = arith.constant 0 : i32
    %c0_i32_0 = arith.constant 0 : i32
    return %c0_i32 : i32
  }
  func.func @transform_5(%arg0: i32) -> (i32, i32) {
    %c0_i32 = arith.constant 0 : i32
    %c0_i32_0 = arith.constant 0 : i32
    return %arg0, %c0_i32 : i32, i32
  }
}

</mosaic_0001>

<llo_original>
// kernel: tpu_custom_call.1
$region0: #{tpu_custom_call.1}
  #allocation0 [shape = 'u32[]', space=smem, size = 0x4, offset = 0x4, fixed_abs, tag = 'smem constant byte address 0x4 - core index']
  #allocation1 [shape = 'u32[72,128]{1,0:T(1,128)}', space=vmem, size = 0x9000, scoped, tag = 'internal scratch']
  %s0 = inlined_call_operand.hbm [shape: f32[2,4,256], index: 0, kind: input, shape index: {}]
  %s1 = inlined_call_operand.hbm [shape: s32[2,256], index: 1, kind: input, shape index: {}]
  %s2 = inlined_call_operand.vmem [shape: f32[4], index: 2, kind: input, shape index: {}]
  %s3 = inlined_call_operand.vmem [shape: f32[27], index: 3, kind: input, shape index: {}]
  %s4 = inlined_call_operand.vmem [shape: f32[2], index: 4, kind: input, shape index: {}]
  %s5 = inlined_call_operand.hbm [shape: f32[2,256], index: 5, kind: output, shape index: {}]
  %s6 = sld [smem:[#allocation0]]
  $region50: #{tpu_custom_call.1} parent=0
    _
  %s8 = ssub.s32 1, %s6
  %s9 = scalar_select 0, %s8, %s6
  $region1: #{tpu_custom_call.1} parent=0
    #allocation2 [shape = 'u8[8192]{0}', space=vmem, size = 0x2000, scoped, tag = 'input window, operand 0, single buffered']
    #allocation3 [shape = 's32[1]{0}', space=sflag, size = 0x4, scoped, tag = 'scoped memory for tpu_custom_call.1']
    #allocation4 [shape = 's32[1]{0}', space=sflag, size = 0x4, scoped, tag = 'scoped memory for tpu_custom_call.1']
    #allocation5 [shape = 's32[1]{0}', space=sflag, size = 0x4, scoped, tag = 'scoped memory for tpu_custom_call.1']
    #allocation6 [shape = 'u8[2048]{0}', space=vmem, size = 0x800, scoped, tag = 'input window, operand 1, single buffered']
    #allocation7 [shape = 's32[1]{0}', space=sflag, size = 0x4, scoped, tag = 'scoped memory for tpu_custom_call.1']
    #allocation8 [shape = 'u8[512]{0}', space=smem, size = 0x200, scoped, tag = 'input window, operand 2, single buffered']
    #allocation9 [shape = 'u8[512]{0}', space=smem, size = 0x200, scoped, tag = 'input window, operand 3, single buffered']
    #allocation10 [shape = 's32[1]{0}', space=sflag, size = 0x4, scoped, tag = 'scoped memory for tpu_custom_call.1']
    #allocation11 [shape = 'u8[512]{0}', space=smem, size = 0x200, scoped, tag = 'input window, operand 4, single buffered']
    #allocation12 [shape = 'u8[2048]{0}', space=vmem, size = 0x800, scoped, tag = 'output window, operand 0, single buffered']
    %10 = vsyncpa [#allocation3], 0
    %11 = vsyncpa [#allocation7], 0
    %12 = vsyncpa [#allocation5], 0
    %13 = vsyncpa [#allocation10], 0
    %14 = vsyncpa [#allocation4], 0
    // Predicated region
    $region2: #{tpu_custom_call.1} parent=1 // pred_check
      _
    $region3: #{tpu_custom_call.1} parent=1 // pred_check_branch
      %16 = sbr.rel (0) target = $region5
    $region4: #{tpu_custom_call.1} parent=1 // pred_region
      %18 = vsyncadd [#allocation3], 0
      %s19 = sshll.u32 %s0, 4
      %s20 = int_to_ptr.hbm [resolvable:$true] %s19
      %s21 = sshll.u32 [#allocation2], 4
      %s22 = int_to_ptr.vmem [resolvable:$true] %s21
      %27 = dma.hbm_to_vmem [thread:$0]  %s20, 256, %s22, [#allocation3], 128, 128, 8
    $region5: #{tpu_custom_call.1} parent=1 // pred_fallthru
      _
    // Predicated region
    $region6: #{tpu_custom_call.1} parent=1 // pred_check
      _
    $region7: #{tpu_custom_call.1} parent=1 // pred_check_branch
      %29 = sbr.rel (0) target = $region9
    $region8: #{tpu_custom_call.1} parent=1 // pred_region
      %31 = vsyncadd [#allocation7], 0
      %s33 = sshll.u32 %s1, 4
      %s34 = int_to_ptr.hbm [resolvable:$true] %s33
      %s35 = sshll.u32 [#allocation6], 4
      %s36 = int_to_ptr.vmem [resolvable:$true] %s35
      %38 = dma.hbm_to_vmem [thread:$0]  %s34, 64, %s36, [#allocation7]
    $region9: #{tpu_custom_call.1} parent=1 // pred_fallthru
      _
    // Predicated region
    $region10: #{tpu_custom_call.1} parent=1 // pred_check
      _
    $region11: #{tpu_custom_call.1} parent=1 // pred_check_branch
      %40 = sbr.rel (0) target = $region13
    $region12: #{tpu_custom_call.1} parent=1 // pred_region
      %42 = vsyncadd [#allocation5], 0
      %s44 = sshll.u32 %s2, 4
      %s45 = int_to_ptr.vmem [resolvable:$true] %s44
      %47 = dma.vmem_to_smem %s45, 16, [#allocation8], [#allocation5]
    $region13: #{tpu_custom_call.1} parent=1 // pred_fallthru
      _
    // Predicated region
    $region14: #{tpu_custom_call.1} parent=1 // pred_check
      _
    $region15: #{tpu_custom_call.1} parent=1 // pred_check_branch
      %49 = sbr.rel (0) target = $region17
    $region16: #{tpu_custom_call.1} parent=1 // pred_region
      %51 = vsyncadd [#allocation10], 0
      %s53 = sshll.u32 %s3, 4
      %s54 = int_to_ptr.vmem [resolvable:$true] %s53
      %56 = dma.vmem_to_smem %s54, 16, [#allocation9], [#allocation10]
    $region17: #{tpu_custom_call.1} parent=1 // pred_fallthru
      _
    // Predicated region
    $region18: #{tpu_custom_call.1} parent=1 // pred_check
      _
    $region19: #{tpu_custom_call.1} parent=1 // pred_check_branch
      %58 = sbr.rel (0) target = $region21
    $region20: #{tpu_custom_call.1} parent=1 // pred_region
      %60 = vsyncadd [#allocation10], 0
      %s62 = sshll.u32 %s4, 4
      %s63 = int_to_ptr.vmem [resolvable:$true] %s62
      %65 = dma.vmem_to_smem %s63, 16, [#allocation11], [#allocation10]
    $region21: #{tpu_custom_call.1} parent=1 // pred_fallthru
      _
    // Predicated region
    $region22: #{tpu_custom_call.1} parent=1 // pred_check
      _
    $region23: #{tpu_custom_call.1} parent=1 // pred_check_branch
      %67 = sbr.rel (0) target = $region25
    $region24: #{tpu_custom_call.1} parent=1 // pred_region
      %69 = dma.done [#allocation3], 256
    $region25: #{tpu_custom_call.1} parent=1 // pred_fallthru
      _
    // Predicated region
    $region26: #{tpu_custom_call.1} parent=1 // pred_check
      _
    $region27: #{tpu_custom_call.1} parent=1 // pred_check_branch
      %71 = sbr.rel (0) target = $region29
    $region28: #{tpu_custom_call.1} parent=1 // pred_region
      %73 = dma.done [#allocation7], 64
    $region29: #{tpu_custom_call.1} parent=1 // pred_fallthru
      _
    // Predicated region
    $region30: #{tpu_custom_call.1} parent=1 // pred_check
      _
    $region31: #{tpu_custom_call.1} parent=1 // pred_check_branch
      %75 = sbr.rel (0) target = $region33
    $region32: #{tpu_custom_call.1} parent=1 // pred_region
      %77 = dma.done [#allocation5], 16
    $region33: #{tpu_custom_call.1} parent=1 // pred_fallthru
      _
    // Predicated region
    $region34: #{tpu_custom_call.1} parent=1 // pred_check
      _
    $region35: #{tpu_custom_call.1} parent=1 // pred_check_branch
      %79 = sbr.rel (0) target = $region37
    $region36: #{tpu_custom_call.1} parent=1 // pred_region
      %81 = dma.done [#allocation10], 16
    $region37: #{tpu_custom_call.1} parent=1 // pred_fallthru
      _
    // Predicated region
    $region38: #{tpu_custom_call.1} parent=1 // pred_check
      _
    $region39: #{tpu_custom_call.1} parent=1 // pred_check_branch
      %83 = sbr.rel (0) target = $region41
    $region40: #{tpu_custom_call.1} parent=1 // pred_region
      %85 = dma.done [#allocation10], 16
    $region41: #{tpu_custom_call.1} parent=1 // pred_fallthru
      _
    %86 = sfence
    %v87 = vld [vmem:[#allocation2] ss:$4 sm:$0x3]
    %s88 = scalar_lea.vmem [#allocation2], 8
    %v89 = vld [vmem:[%s88] ss:$4 sm:$0x3]
    %s90 = sld [smem:[#allocation8]]
    %v91 = vstv %s90
    %v92 = vmul.f32 %v91, %v87
    %v93 = vmul.f32 %v91, %v89
    %s94 = scalar_lea.vmem [#allocation2], 1
    %v95 = vld [vmem:[%s94] ss:$4 sm:$0x3]
    %s96 = scalar_lea.vmem [#allocation2], 9
    %v97 = vld [vmem:[%s96] ss:$4 sm:$0x3]
    %s98 = sld [smem:[#allocation8 + $0x1]]
    %v99 = vstv %s98
    %v100 = vmul.f32 %v99, %v95
    %v101 = vmul.f32 %v99, %v97
    %v102 = vadd.f32 %v92, %v100
    %v103 = vadd.f32 %v93, %v101
    %v104 = vadd.f32 %v87, %v95
    %v105 = vadd.f32 %v89, %v97
    %v106 = vmax.f32 %v87, %v95
    %v107 = vmax.f32 %v89, %v97
    %s108 = scalar_lea.vmem [#allocation2], 2
    %v109 = vld [vmem:[%s108] ss:$4 sm:$0x3]
    %s110 = scalar_lea.vmem [#allocation2], 10
    %v111 = vld [vmem:[%s110] ss:$4 sm:$0x3]
    %s112 = sld [smem:[#allocation8 + $0x2]]
    %v113 = vstv %s112
    %v114 = vmul.f32 %v113, %v109
    %v115 = vmul.f32 %v113, %v111
    %v116 = vadd.f32 %v102, %v114
    %v117 = vadd.f32 %v103, %v115
    %v118 = vadd.f32 %v104, %v109
    %v119 = vadd.f32 %v105, %v111
    %v120 = vmax.f32 %v106, %v109
    %v121 = vmax.f32 %v107, %v111
    %s122 = scalar_lea.vmem [#allocation2], 3
    %v123 = vld [vmem:[%s122] ss:$4 sm:$0x3]
    %s124 = scalar_lea.vmem [#allocation2], 11
    %v125 = vld [vmem:[%s124] ss:$4 sm:$0x3]
    %s126 = sld [smem:[#allocation8 + $0x3]]
    %v127 = vstv %s126
    %v128 = vmul.f32 %v127, %v123
    %v129 = vmul.f32 %v127, %v125
    %v130 = vadd.f32 %v116, %v128
    %v131 = vadd.f32 %v117, %v129
    %v132 = vadd.f32 %v118, %v123
    %v133 = vadd.f32 %v119, %v125
    %v134 = vmax.f32 %v120, %v123
    %v135 = vmax.f32 %v121, %v125
    %s136 = sld [smem:[#allocation11]]
    %v137 = vstv %s136
    %v138 = vadd.f32 %v130, %v137
    %v139 = vadd.f32 %v131, %v137
    %v140 = vmul.f32 %v132, 0.25
    %v141 = vmul.f32 %v133, 0.25
    %v142 = vld [vmem:[#allocation6] ss:$2 sm:$0x3]
    %s143 = scalar_lea.vmem [#allocation6], 1
    %v144 = vld [vmem:[%s143] ss:$2 sm:$0x3]
    %vm145 = vcmp.ge.s32.totalorder %v142, 1
    %vm146 = vcmp.lt.s32.totalorder %v142, 15
    %vm147 = vcmp.ge.s32.totalorder %v144, 1
    %vm148 = vcmp.lt.s32.totalorder %v144, 15
    %vm149 = vmand %vm145, %vm147
    %vm150 = vmand %vm145, %vm148
    %vm151 = vmand %vm146, %vm147
    %vm152 = vmand %vm146, %vm148
    %s153 = sld [smem:[#allocation9]]
    %156 = vst [vmem:[#allocation1] ss:$9 sm:$0xff] %v138
    %s157 = scalar_lea.vmem [#allocation1], 1
    %158 = vst [vmem:[%s157] ss:$9 sm:$0xff] %v139
    %v159 = vld [vmem:[#allocation1] sm:$0xff]
    %v160 = vld [vmem:[#allocation1 + $0x9] sm:$0xff]
    %163 = vrot.lane.b32.xlu0 %v159, 17
    %v164 = vpop.permute.xlu0 %163
    %165 = vrot.lane.b32.xlu0 %v160, 17
    %v166 = vpop.permute.xlu0 %165
    %v167 = vlaneseq
    %v168 = vand.u32 %v167, 127
    %vm169 = vcmp.lt.s32.totalorder %v168, 17
    %v170 = vsel %vm169, %v164, %v166
    %v171 = vsel %vm169, %v166, %v164
    %v172 = vsel %vm149, 1, 0
    %v173 = vperm.slane %v172, 0
    %v174 = vperm.slane %v172, 1
    %vm175 = vcmp.eq.s32.totalorder %v173, 1
    %vm176 = vcmp.eq.s32.totalorder %v174, 1
    %v177 = vsel %vm175, %v171, 0.0
    %v178 = vsel %vm176, %v170, 0.0
    %v179 = vstv %s153
    %v180 = vmul.f32 %v179, %v177
    %v181 = vmul.f32 %v179, %v178
    %s182 = sld [smem:[#allocation9 + $0x1]]
    %183 = vst [vmem:[#allocation1] ss:$9 sm:$0xff] %v138
    %s184 = scalar_lea.vmem [#allocation1], 1
    %185 = vst [vmem:[%s184] ss:$9 sm:$0xff] %v139
    %v186 = vld [vmem:[#allocation1] sm:$0xff]
    %v187 = vld [vmem:[#allocation1 + $0x9] sm:$0xff]
    %190 = vrot.lane.b32.xlu0 %v186, 16
    %v191 = vpop.permute.xlu0 %190
    %192 = vrot.lane.b32.xlu0 %v187, 16
    %v193 = vpop.permute.xlu0 %192
    %vm194 = vcmp.lt.s32.totalorder %v168, 16
    %v195 = vsel %vm194, %v191, %v193
    %v196 = vsel %vm194, %v193, %v191
    %v197 = vsel %vm145, 1, 0
    %v198 = vperm.slane %v197, 0
    %v199 = vperm.slane %v197, 1
    %vm200 = vcmp.eq.s32.totalorder %v198, 1
    %vm201 = vcmp.eq.s32.totalorder %v199, 1
    %v202 = vsel %vm200, %v196, 0.0
    %v203 = vsel %vm201, %v195, 0.0
    %v204 = vstv %s182
    %v205 = vmul.f32 %v204, %v202
    %v206 = vmul.f32 %v204, %v203
    %v207 = vadd.f32 %v180, %v205
    %v208 = vadd.f32 %v181, %v206
    %s209 = sld [smem:[#allocation9 + $0x2]]
    %210 = vst [vmem:[#allocation1] ss:$9 sm:$0xff] %v138
    %s211 = scalar_lea.vmem [#allocation1], 1
    %212 = vst [vmem:[%s211] ss:$9 sm:$0xff] %v139
    %v213 = vld [vmem:[#allocation1] sm:$0xff]
    %v214 = vld [vmem:[#allocation1 + $0x9] sm:$0xff]
    %217 = vrot.lane.b32.xlu0 %v213, 15
    %v218 = vpop.permute.xlu0 %217
    %219 = vrot.lane.b32.xlu0 %v214, 15
    %v220 = vpop.permute.xlu0 %219
    %vm221 = vcmp.lt.s32.totalorder %v168, 15
    %v222 = vsel %vm221, %v218, %v220
    %v223 = vsel %vm221, %v220, %v218
    %v224 = vsel %vm150, 1, 0
    %v225 = vperm.slane %v224, 0
    %v226 = vperm.slane %v224, 1
    %vm227 = vcmp.eq.s32.totalorder %v225, 1
    %vm228 = vcmp.eq.s32.totalorder %v226, 1
    %v229 = vsel %vm227, %v223, 0.0
    %v230 = vsel %vm228, %v222, 0.0
    %v231 = vstv %s209
    %v232 = vmul.f32 %v231, %v229
    %v233 = vmul.f32 %v231, %v230
    %v234 = vadd.f32 %v207, %v232
    %v235 = vadd.f32 %v208, %v233
    %s236 = sld [smem:[#allocation9 + $0x3]]
    %237 = vst [vmem:[#allocation1] ss:$9 sm:$0xff] %v138
    %s238 = scalar_lea.vmem [#allocation1], 1
    %239 = vst [vmem:[%s238] ss:$9 sm:$0xff] %v139
    %v240 = vld [vmem:[#allocation1] sm:$0xff]
    %v241 = vld [vmem:[#allocation1 + $0x9] sm:$0xff]
    %244 = vrot.lane.b32.xlu0 %v240, 1
    %v245 = vpop.permute.xlu0 %244
    %246 = vrot.lane.b32.xlu0 %v241, 1
    %v247 = vpop.permute.xlu0 %246
    %vm248 = vcmp.lt.s32.totalorder %v168, 1
    %v249 = vsel %vm248, %v245, %v247
    %v250 = vsel %vm248, %v247, %v245
    %v251 = vsel %vm147, 1, 0
    %v252 = vperm.slane %v251, 0
    %v253 = vperm.slane %v251, 1
    %vm254 = vcmp.eq.s32.totalorder %v252, 1
    %vm255 = vcmp.eq.s32.totalorder %v253, 1
    %v256 = vsel %vm254, %v250, 0.0
    %v257 = vsel %vm255, %v249, 0.0
    %v258 = vstv %s236
    %v259 = vmul.f32 %v258, %v256
    %v260 = vmul.f32 %v258, %v257
    %v261 = vadd.f32 %v234, %v259
    %v262 = vadd.f32 %v235, %v260
    %s263 = sld [smem:[#allocation9 + $0x4]]
    %v264 = vstv %s263
    %v265 = vmul.f32 %v264, %v138
    %v266 = vmul.f32 %v264, %v139
    %269 = vst [vmem:[#allocation1] ss:$9 sm:$0xff] %v265
    %s270 = scalar_lea.vmem [#allocation1], 1
    %271 = vst [vmem:[%s270] ss:$9 sm:$0xff] %v266
    %v272 = vld [vmem:[#allocation1] sm:$0xff]
    %v273 = vld [vmem:[#allocation1 + $0x9] sm:$0xff]
    %v276 = vadd.f32 %v261, %v272
    %v277 = vadd.f32 %v262, %v273
    %s278 = sld [smem:[#allocation9 + $0x5]]
    %279 = vst [vmem:[#allocation1] ss:$9 sm:$0xff] %v138
    %s280 = scalar_lea.vmem [#allocation1], 1
    %281 = vst [vmem:[%s280] ss:$9 sm:$0xff] %v139
    %v282 = vld [vmem:[#allocation1] sm:$0xff]
    %v283 = vld [vmem:[#allocation1 + $0x9] sm:$0xff]
    %286 = vrot.lane.b32.xlu0 %v282, 127
    %v287 = vpop.permute.xlu0 %286
    %288 = vrot.lane.b32.xlu0 %v283, 127
    %v289 = vpop.permute.xlu0 %288
    %vm290 = vcmp.lt.s32.totalorder %v168, 127
    %v291 = vsel %vm290, %v287, %v289
    %v292 = vsel %vm290, %v289, %v287
    %v293 = vsel %vm148, 1, 0
    %v294 = vperm.slane %v293, 0
    %v295 = vperm.slane %v293, 1
    %vm296 = vcmp.eq.s32.totalorder %v294, 1
    %vm297 = vcmp.eq.s32.totalorder %v295, 1
    %v298 = vsel %vm296, %v291, 0.0
    %v299 = vsel %vm297, %v292, 0.0
    %v300 = vstv %s278
    %v301 = vmul.f32 %v300, %v298
    %v302 = vmul.f32 %v300, %v299
    %v303 = vadd.f32 %v276, %v301
    %v304 = vadd.f32 %v277, %v302
    %s305 = sld [smem:[#allocation9 + $0x6]]
    %306 = vst [vmem:[#allocation1] ss:$9 sm:$0xff] %v138
    %s307 = scalar_lea.vmem [#allocation1], 1
    %308 = vst [vmem:[%s307] ss:$9 sm:$0xff] %v139
    %v309 = vld [vmem:[#allocation1] sm:$0xff]
    %v310 = vld [vmem:[#allocation1 + $0x9] sm:$0xff]
    %313 = vrot.lane.b32.xlu0 %v309, 113
    %v314 = vpop.permute.xlu0 %313
    %315 = vrot.lane.b32.xlu0 %v310, 113
    %v316 = vpop.permute.xlu0 %315
    %vm317 = vcmp.lt.s32.totalorder %v168, 113
    %v318 = vsel %vm317, %v314, %v316
    %v319 = vsel %vm317, %v316, %v314
    %v320 = vsel %vm151, 1, 0
    %v321 = vperm.slane %v320, 0
    %v322 = vperm.slane %v320, 1
    %vm323 = vcmp.eq.s32.totalorder %v321, 1
    %vm324 = vcmp.eq.s32.totalorder %v322, 1
    %v325 = vsel %vm323, %v318, 0.0
    %v326 = vsel %vm324, %v319, 0.0
    %v327 = vstv %s305
    %v328 = vmul.f32 %v327, %v325
    %v329 = vmul.f32 %v327, %v326
    %v330 = vadd.f32 %v303, %v328
    %v331 = vadd.f32 %v304, %v329
    %s332 = sld [smem:[#allocation9 + $0x7]]
    %333 = vst [vmem:[#allocation1] ss:$9 sm:$0xff] %v138
    %s334 = scalar_lea.vmem [#allocation1], 1
    %335 = vst [vmem:[%s334] ss:$9 sm:$0xff] %v139
    %v336 = vld [vmem:[#allocation1] sm:$0xff]
    %v337 = vld [vmem:[#allocation1 + $0x9] sm:$0xff]
    %340 = vrot.lane.b32.xlu0 %v336, 112
    %v341 = vpop.permute.xlu0 %340
    %342 = vrot.lane.b32.xlu0 %v337, 112
    %v343 = vpop.permute.xlu0 %342
    %vm344 = vcmp.lt.s32.totalorder %v168, 112
    %v345 = vsel %vm344, %v341, %v343
    %v346 = vsel %vm344, %v343, %v341
    %v347 = vsel %vm146, 1, 0
    %v348 = vperm.slane %v347, 0
    %v349 = vperm.slane %v347, 1
    %vm350 = vcmp.eq.s32.totalorder %v348, 1
    %vm351 = vcmp.eq.s32.totalorder %v349, 1
    %v352 = vsel %vm350, %v345, 0.0
    %v353 = vsel %vm351, %v346, 0.0
    %v354 = vstv %s332
    %v355 = vmul.f32 %v354, %v352
    %v356 = vmul.f32 %v354, %v353
    %v357 = vadd.f32 %v330, %v355
    %v358 = vadd.f32 %v331, %v356
    %s359 = sld [smem:[#allocation9 + $0x8]]
    %360 = vst [vmem:[#allocation1] ss:$9 sm:$0xff] %v138
    %s361 = scalar_lea.vmem [#allocation1], 1
    %362 = vst [vmem:[%s361] ss:$9 sm:$0xff] %v139
    %v363 = vld [vmem:[#allocation1] sm:$0xff]
    %v364 = vld [vmem:[#allocation1 + $0x9] sm:$0xff]
    %367 = vrot.lane.b32.xlu0 %v363, 111
    %v368 = vpop.permute.xlu0 %367
    %369 = vrot.lane.b32.xlu0 %v364, 111
    %v370 = vpop.permute.xlu0 %369
    %vm371 = vcmp.lt.s32.totalorder %v168, 111
    %v372 = vsel %vm371, %v368, %v370
    %v373 = vsel %vm371, %v370, %v368
    %v374 = vsel %vm152, 1, 0
    %v375 = vperm.slane %v374, 0
    %v376 = vperm.slane %v374, 1
    %vm377 = vcmp.eq.s32.totalorder %v375, 1
    %vm378 = vcmp.eq.s32.totalorder %v376, 1
    %v379 = vsel %vm377, %v372, 0.0
    %v380 = vsel %vm378, %v373, 0.0
    %v381 = vstv %s359
    %v382 = vmul.f32 %v381, %v379
    %v383 = vmul.f32 %v381, %v380
    %v384 = vadd.f32 %v357, %v382
    %v385 = vadd.f32 %v358, %v383
    %s386 = sld [smem:[#allocation9 + $0x9]]
    %389 = vst [vmem:[#allocation1] ss:$9 sm:$0xff] %v140
    %s390 = scalar_lea.vmem [#allocation1], 1
    %391 = vst [vmem:[%s390] ss:$9 sm:$0xff] %v141
    %v392 = vld [vmem:[#allocation1] sm:$0xff]
    %v393 = vld [vmem:[#allocation1 + $0x9] sm:$0xff]
    %396 = vrot.lane.b32.xlu0 %v392, 17
    %v397 = vpop.permute.xlu0 %396
    %398 = vrot.lane.b32.xlu0 %v393, 17
    %v399 = vpop.permute.xlu0 %398
    %v400 = vsel %vm169, %v397, %v399
    %v401 = vsel %vm169, %v399, %v397
    %v402 = vsel %vm175, %v401, 0.0
    %v403 = vsel %vm176, %v400, 0.0
    %v404 = vstv %s386
    %v405 = vmul.f32 %v404, %v402
    %v406 = vmul.f32 %v404, %v403
    %s407 = sld [smem:[#allocation9 + $0xa]]
    %408 = vst [vmem:[#allocation1] ss:$9 sm:$0xff] %v140
    %s409 = scalar_lea.vmem [#allocation1], 1
    %410 = vst [vmem:[%s409] ss:$9 sm:$0xff] %v141
    %v411 = vld [vmem:[#allocation1] sm:$0xff]
    %v412 = vld [vmem:[#allocation1 + $0x9] sm:$0xff]
    %415 = vrot.lane.b32.xlu0 %v411, 16
    %v416 = vpop.permute.xlu0 %415
    %417 = vrot.lane.b32.xlu0 %v412, 16
    %v418 = vpop.permute.xlu0 %417
    %v419 = vsel %vm194, %v416, %v418
    %v420 = vsel %vm194, %v418, %v416
    %v421 = vsel %vm200, %v420, 0.0
    %v422 = vsel %vm201, %v419, 0.0
    %v423 = vstv %s407
    %v424 = vmul.f32 %v423, %v421
    %v425 = vmul.f32 %v423, %v422
    %v426 = vadd.f32 %v405, %v424
    %v427 = vadd.f32 %v406, %v425
    %s428 = sld [smem:[#allocation9 + $0xb]]
    %429 = vst [vmem:[#allocation1] ss:$9 sm:$0xff] %v140
    %s430 = scalar_lea.vmem [#allocation1], 1
    %431 = vst [vmem:[%s430] ss:$9 sm:$0xff] %v141
    %v432 = vld [vmem:[#allocation1] sm:$0xff]
    %v433 = vld [vmem:[#allocation1 + $0x9] sm:$0xff]
    %436 = vrot.lane.b32.xlu0 %v432, 15
    %v437 = vpop.permute.xlu0 %436
    %438 = vrot.lane.b32.xlu0 %v433, 15
    %v439 = vpop.permute.xlu0 %438
    %v440 = vsel %vm221, %v437, %v439
    %v441 = vsel %vm221, %v439, %v437
    %v442 = vsel %vm227, %v441, 0.0
    %v443 = vsel %vm228, %v440, 0.0
    %v444 = vstv %s428
    %v445 = vmul.f32 %v444, %v442
    %v446 = vmul.f32 %v444, %v443
    %v447 = vadd.f32 %v426, %v445
    %v448 = vadd.f32 %v427, %v446
    %s449 = sld [smem:[#allocation9 + $0xc]]
    %450 = vst [vmem:[#allocation1] ss:$9 sm:$0xff] %v140
    %s451 = scalar_lea.vmem [#allocation1], 1
    %452 = vst [vmem:[%s451] ss:$9 sm:$0xff] %v141
    %v453 = vld [vmem:[#allocation1] sm:$0xff]
    %v454 = vld [vmem:[#allocation1 + $0x9] sm:$0xff]
    %457 = vrot.lane.b32.xlu0 %v453, 1
    %v458 = vpop.permute.xlu0 %457
    %459 = vrot.lane.b32.xlu0 %v454, 1
    %v460 = vpop.permute.xlu0 %459
    %v461 = vsel %vm248, %v458, %v460
    %v462 = vsel %vm248, %v460, %v458
    %v463 = vsel %vm254, %v462, 0.0
    %v464 = vsel %vm255, %v461, 0.0
    %v465 = vstv %s449
    %v466 = vmul.f32 %v465, %v463
    %v467 = vmul.f32 %v465, %v464
    %v468 = vadd.f32 %v447, %v466
    %v469 = vadd.f32 %v448, %v467
    %s470 = sld [smem:[#allocation9 + $0xd]]
    %v471 = vstv %s470
    %v472 = vmul.f32 %v471, %v140
    %v473 = vmul.f32 %v471, %v141
    %476 = vst [vmem:[#allocation1] ss:$9 sm:$0xff] %v472
    %s477 = scalar_lea.vmem [#allocation1], 1
    %478 = vst [vmem:[%s477] ss:$9 sm:$0xff] %v473
    %v479 = vld [vmem:[#allocation1] sm:$0xff]
    %v480 = vld [vmem:[#allocation1 + $0x9] sm:$0xff]
    %v483 = vadd.f32 %v468, %v479
    %v484 = vadd.f32 %v469, %v480
    %s485 = sld [smem:[#allocation9 + $0xe]]
    %486 = vst [vmem:[#allocation1] ss:$9 sm:$0xff] %v140
    %s487 = scalar_lea.vmem [#allocation1], 1
    %488 = vst [vmem:[%s487] ss:$9 sm:$0xff] %v141
    %v489 = vld [vmem:[#allocation1] sm:$0xff]
    %v490 = vld [vmem:[#allocation1 + $0x9] sm:$0xff]
    %493 = vrot.lane.b32.xlu0 %v489, 127
    %v494 = vpop.permute.xlu0 %493
    %495 = vrot.lane.b32.xlu0 %v490, 127
    %v496 = vpop.permute.xlu0 %495
    %v497 = vsel %vm290, %v494, %v496
    %v498 = vsel %vm290, %v496, %v494
    %v499 = vsel %vm296, %v497, 0.0
    %v500 = vsel %vm297, %v498, 0.0
    %v501 = vstv %s485
    %v502 = vmul.f32 %v501, %v499
    %v503 = vmul.f32 %v501, %v500
    %v504 = vadd.f32 %v483, %v502
    %v505 = vadd.f32 %v484, %v503
    %s506 = sld [smem:[#allocation9 + $0xf]]
    %507 = vst [vmem:[#allocation1] ss:$9 sm:$0xff] %v140
    %s508 = scalar_lea.vmem [#allocation1], 1
    %509 = vst [vmem:[%s508] ss:$9 sm:$0xff] %v141
    %v510 = vld [vmem:[#allocation1] sm:$0xff]
    %v511 = vld [vmem:[#allocation1 + $0x9] sm:$0xff]
    %514 = vrot.lane.b32.xlu0 %v510, 113
    %v515 = vpop.permute.xlu0 %514
    %516 = vrot.lane.b32.xlu0 %v511, 113
    %v517 = vpop.permute.xlu0 %516
    %v518 = vsel %vm317, %v515, %v517
    %v519 = vsel %vm317, %v517, %v515
    %v520 = vsel %vm323, %v518, 0.0
    %v521 = vsel %vm324, %v519, 0.0
    %v522 = vstv %s506
    %v523 = vmul.f32 %v522, %v520
    %v524 = vmul.f32 %v522, %v521
    %v525 = vadd.f32 %v504, %v523
    %v526 = vadd.f32 %v505, %v524
    %s527 = sld [smem:[#allocation9 + $0x10]]
    %528 = vst [vmem:[#allocation1] ss:$9 sm:$0xff] %v140
    %s529 = scalar_lea.vmem [#allocation1], 1
    %530 = vst [vmem:[%s529] ss:$9 sm:$0xff] %v141
    %v531 = vld [vmem:[#allocation1] sm:$0xff]
    %v532 = vld [vmem:[#allocation1 + $0x9] sm:$0xff]
    %535 = vrot.lane.b32.xlu0 %v531, 112
    %v536 = vpop.permute.xlu0 %535
    %537 = vrot.lane.b32.xlu0 %v532, 112
    %v538 = vpop.permute.xlu0 %537
    %v539 = vsel %vm344, %v536, %v538
    %v540 = vsel %vm344, %v538, %v536
    %v541 = vsel %vm350, %v539, 0.0
    %v542 = vsel %vm351, %v540, 0.0
    %v543 = vstv %s527
    %v544 = vmul.f32 %v543, %v541
    %v545 = vmul.f32 %v543, %v542
    %v546 = vadd.f32 %v525, %v544
    %v547 = vadd.f32 %v526, %v545
    %s548 = sld [smem:[#allocation9 + $0x11]]
    %549 = vst [vmem:[#allocation1] ss:$9 sm:$0xff] %v140
    %s550 = scalar_lea.vmem [#allocation1], 1
    %551 = vst [vmem:[%s550] ss:$9 sm:$0xff] %v141
    %v552 = vld [vmem:[#allocation1] sm:$0xff]
    %v553 = vld [vmem:[#allocation1 + $0x9] sm:$0xff]
    %556 = vrot.lane.b32.xlu0 %v552, 111
    %v557 = vpop.permute.xlu0 %556
    %558 = vrot.lane.b32.xlu0 %v553, 111
    %v559 = vpop.permute.xlu0 %558
    %v560 = vsel %vm371, %v557, %v559
    %v561 = vsel %vm371, %v559, %v557
    %v562 = vsel %vm377, %v560, 0.0
    %v563 = vsel %vm378, %v561, 0.0
    %v564 = vstv %s548
    %v565 = vmul.f32 %v564, %v562
    %v566 = vmul.f32 %v564, %v563
    %v567 = vadd.f32 %v546, %v565
    %v568 = vadd.f32 %v547, %v566
    %s569 = sld [smem:[#allocation9 + $0x12]]
    %572 = vst [vmem:[#allocation1] ss:$9 sm:$0xff] %v134
    %s573 = scalar_lea.vmem [#allocation1], 1
    %574 = vst [vmem:[%s573] ss:$9 sm:$0xff] %v135
    %v575 = vld [vmem:[#allocation1] sm:$0xff]
    %v576 = vld [vmem:[#allocation1 + $0x9] sm:$0xff]
    %579 = vrot.lane.b32.xlu0 %v575, 17
    %v580 = vpop.permute.xlu0 %579
    %581 = vrot.lane.b32.xlu0 %v576, 17
    %v582 = vpop.permute.xlu0 %581
    %v583 = vsel %vm169, %v580, %v582
    %v584 = vsel %vm169, %v582, %v580
    %v585 = vsel %vm175, %v584, 0.0
    %v586 = vsel %vm176, %v583, 0.0
    %v587 = vstv %s569
    %v588 = vmul.f32 %v587, %v585
    %v589 = vmul.f32 %v587, %v586
    %s590 = sld [smem:[#allocation9 + $0x13]]
    %591 = vst [vmem:[#allocation1] ss:$9 sm:$0xff] %v134
    %s592 = scalar_lea.vmem [#allocation1], 1
    %593 = vst [vmem:[%s592] ss:$9 sm:$0xff] %v135
    %v594 = vld [vmem:[#allocation1] sm:$0xff]
    %v595 = vld [vmem:[#allocation1 + $0x9] sm:$0xff]
    %598 = vrot.lane.b32.xlu0 %v594, 16
    %v599 = vpop.permute.xlu0 %598
    %600 = vrot.lane.b32.xlu0 %v595, 16
    %v601 = vpop.permute.xlu0 %600
    %v602 = vsel %vm194, %v599, %v601
    %v603 = vsel %vm194, %v601, %v599
    %v604 = vsel %vm200, %v603, 0.0
    %v605 = vsel %vm201, %v602, 0.0
    %v606 = vstv %s590
    %v607 = vmul.f32 %v606, %v604
    %v608 = vmul.f32 %v606, %v605
    %v609 = vadd.f32 %v588, %v607
    %v610 = vadd.f32 %v589, %v608
    %s611 = sld [smem:[#allocation9 + $0x14]]
    %612 = vst [vmem:[#allocation1] ss:$9 sm:$0xff] %v134
    %s613 = scalar_lea.vmem [#allocation1], 1
    %614 = vst [vmem:[%s613] ss:$9 sm:$0xff] %v135
    %v615 = vld [vmem:[#allocation1] sm:$0xff]
    %v616 = vld [vmem:[#allocation1 + $0x9] sm:$0xff]
    %619 = vrot.lane.b32.xlu0 %v615, 15
    %v620 = vpop.permute.xlu0 %619
    %621 = vrot.lane.b32.xlu0 %v616, 15
    %v622 = vpop.permute.xlu0 %621
    %v623 = vsel %vm221, %v620, %v622
    %v624 = vsel %vm221, %v622, %v620
    %v625 = vsel %vm227, %v624, 0.0
    %v626 = vsel %vm228, %v623, 0.0
    %v627 = vstv %s611
    %v628 = vmul.f32 %v627, %v625
    %v629 = vmul.f32 %v627, %v626
    %v630 = vadd.f32 %v609, %v628
    %v631 = vadd.f32 %v610, %v629
    %s632 = sld [smem:[#allocation9 + $0x15]]
    %633 = vst [vmem:[#allocation1] ss:$9 sm:$0xff] %v134
    %s634 = scalar_lea.vmem [#allocation1], 1
    %635 = vst [vmem:[%s634] ss:$9 sm:$0xff] %v135
    %v636 = vld [vmem:[#allocation1] sm:$0xff]
    %v637 = vld [vmem:[#allocation1 + $0x9] sm:$0xff]
    %640 = vrot.lane.b32.xlu0 %v636, 1
    %v641 = vpop.permute.xlu0 %640
    %642 = vrot.lane.b32.xlu0 %v637, 1
    %v643 = vpop.permute.xlu0 %642
    %v644 = vsel %vm248, %v641, %v643
    %v645 = vsel %vm248, %v643, %v641
    %v646 = vsel %vm254, %v645, 0.0
    %v647 = vsel %vm255, %v644, 0.0
    %v648 = vstv %s632
    %v649 = vmul.f32 %v648, %v646
    %v650 = vmul.f32 %v648, %v647
    %v651 = vadd.f32 %v630, %v649
    %v652 = vadd.f32 %v631, %v650
    %s653 = sld [smem:[#allocation9 + $0x16]]
    %v654 = vstv %s653
    %v655 = vmul.f32 %v654, %v134
    %v656 = vmul.f32 %v654, %v135
    %659 = vst [vmem:[#allocation1] ss:$9 sm:$0xff] %v655
    %s660 = scalar_lea.vmem [#allocation1], 1
    %661 = vst [vmem:[%s660] ss:$9 sm:$0xff] %v656
    %v662 = vld [vmem:[#allocation1] sm:$0xff]
    %v663 = vld [vmem:[#allocation1 + $0x9] sm:$0xff]
    %v666 = vadd.f32 %v651, %v662
    %v667 = vadd.f32 %v652, %v663
    %s668 = sld [smem:[#allocation9 + $0x17]]
    %669 = vst [vmem:[#allocation1] ss:$9 sm:$0xff] %v134
    %s670 = scalar_lea.vmem [#allocation1], 1
    %671 = vst [vmem:[%s670] ss:$9 sm:$0xff] %v135
    %v672 = vld [vmem:[#allocation1] sm:$0xff]
    %v673 = vld [vmem:[#allocation1 + $0x9] sm:$0xff]
    %676 = vrot.lane.b32.xlu0 %v672, 127
    %v677 = vpop.permute.xlu0 %676
    %678 = vrot.lane.b32.xlu0 %v673, 127
    %v679 = vpop.permute.xlu0 %678
    %v680 = vsel %vm290, %v677, %v679
    %v681 = vsel %vm290, %v679, %v677
    %v682 = vsel %vm296, %v680, 0.0
    %v683 = vsel %vm297, %v681, 0.0
    %v684 = vstv %s668
    %v685 = vmul.f32 %v684, %v682
    %v686 = vmul.f32 %v684, %v683
    %v687 = vadd.f32 %v666, %v685
    %v688 = vadd.f32 %v667, %v686
    %s689 = sld [smem:[#allocation9 + $0x18]]
    %690 = vst [vmem:[#allocation1] ss:$9 sm:$0xff] %v134
    %s691 = scalar_lea.vmem [#allocation1], 1
    %692 = vst [vmem:[%s691] ss:$9 sm:$0xff] %v135
    %v693 = vld [vmem:[#allocation1] sm:$0xff]
    %v694 = vld [vmem:[#allocation1 + $0x9] sm:$0xff]
    %697 = vrot.lane.b32.xlu0 %v693, 113
    %v698 = vpop.permute.xlu0 %697
    %699 = vrot.lane.b32.xlu0 %v694, 113
    %v700 = vpop.permute.xlu0 %699
    %v701 = vsel %vm317, %v698, %v700
    %v702 = vsel %vm317, %v700, %v698
    %v703 = vsel %vm323, %v701, 0.0
    %v704 = vsel %vm324, %v702, 0.0
    %v705 = vstv %s689
    %v706 = vmul.f32 %v705, %v703
    %v707 = vmul.f32 %v705, %v704
    %v708 = vadd.f32 %v687, %v706
    %v709 = vadd.f32 %v688, %v707
    %s710 = sld [smem:[#allocation9 + $0x19]]
    %711 = vst [vmem:[#allocation1] ss:$9 sm:$0xff] %v134
    %s712 = scalar_lea.vmem [#allocation1], 1
    %713 = vst [vmem:[%s712] ss:$9 sm:$0xff] %v135
    %v714 = vld [vmem:[#allocation1] sm:$0xff]
    %v715 = vld [vmem:[#allocation1 + $0x9] sm:$0xff]
    %718 = vrot.lane.b32.xlu0 %v714, 112
    %v719 = vpop.permute.xlu0 %718
    %720 = vrot.lane.b32.xlu0 %v715, 112
    %v721 = vpop.permute.xlu0 %720
    %v722 = vsel %vm344, %v719, %v721
    %v723 = vsel %vm344, %v721, %v719
    %v724 = vsel %vm350, %v722, 0.0
    %v725 = vsel %vm351, %v723, 0.0
    %v726 = vstv %s710
    %v727 = vmul.f32 %v726, %v724
    %v728 = vmul.f32 %v726, %v725
    %v729 = vadd.f32 %v708, %v727
    %v730 = vadd.f32 %v709, %v728
    %s731 = sld [smem:[#allocation9 + $0x1a]]
    %732 = vst [vmem:[#allocation1] ss:$9 sm:$0xff] %v134
    %s733 = scalar_lea.vmem [#allocation1], 1
    %734 = vst [vmem:[%s733] ss:$9 sm:$0xff] %v135
    %v735 = vld [vmem:[#allocation1] sm:$0xff]
    %v736 = vld [vmem:[#allocation1 + $0x9] sm:$0xff]
    %739 = vrot.lane.b32.xlu0 %v735, 111
    %v740 = vpop.permute.xlu0 %739
    %741 = vrot.lane.b32.xlu0 %v736, 111
    %v742 = vpop.permute.xlu0 %741
    %v743 = vsel %vm371, %v740, %v742
    %v744 = vsel %vm371, %v742, %v740
    %v745 = vsel %vm377, %v743, 0.0
    %v746 = vsel %vm378, %v744, 0.0
    %v747 = vstv %s731
    %v748 = vmul.f32 %v747, %v745
    %v749 = vmul.f32 %v747, %v746
    %v750 = vadd.f32 %v729, %v748
    %v751 = vadd.f32 %v730, %v749
    %v752 = vadd.f32 %v384, %v567
    %v753 = vadd.f32 %v385, %v568
    %v754 = vadd.f32 %v752, %v750
    %v755 = vadd.f32 %v753, %v751
    %s756 = sld [smem:[#allocation11 + $0x1]]
    %v757 = vstv %s756
    %v758 = vadd.f32 %v754, %v757
    %v759 = vadd.f32 %v755, %v757
    %v760 = vxor.u32 %v758, 2147483648
    %v761 = vxor.u32 %v759, 2147483648
    %v762 = vmul.f32 %v760, 1.442695
    %v763 = vpow.pop %v762
    %v764 = vmul.f32 %v761, 1.442695
    %v765 = vpow.pop %v764
    %v766 = vadd.f32 %v763, 1.0
    %v767 = vadd.f32 %v765, 1.0
    %v768 = vrcp.pop %v766
    %v769 = vmul.f32 %v766, %v768
    %v770 = vsub.f32 1.0, %v769
    %v771 = vmul.f32 %v768, %v770
    %v772 = vadd.f32 %v768, %v771
    %vm773 = vweird.f32 %v766
    %vm774 = vweird.f32 %v768
    %vm775 = vmor %vm773, %vm774
    %v776 = vsel %vm775, %v768, %v772
    %v777 = vand.u32 2147483647, %v766
    %vm778 = vcmp.eq.f32.partialorder %v777, 8.507059e+37
    %v779 = vand.u32 %v766, 2147483648
    %v780 = vor.u32 1.1754944e-38, %v779
    %v781 = vsel %vm778, %v780, %v776
    %v782 = vmul.f32 1.0, %v781
    %v783 = vrcp.pop %v767
    %v784 = vmul.f32 %v767, %v783
    %v785 = vsub.f32 1.0, %v784
    %v786 = vmul.f32 %v783, %v785
    %v787 = vadd.f32 %v783, %v786
    %vm788 = vweird.f32 %v767
    %vm789 = vweird.f32 %v783
    %vm790 = vmor %vm788, %vm789
    %v791 = vsel %vm790, %v783, %v787
    %v792 = vand.u32 2147483647, %v767
    %vm793 = vcmp.eq.f32.partialorder %v792, 8.507059e+37
    %v794 = vand.u32 %v767, 2147483648
    %v795 = vor.u32 1.1754944e-38, %v794
    %v796 = vsel %vm793, %v795, %v791
    %v797 = vmul.f32 1.0, %v796
    %v800 = vrot.slane %v797, 6
    %vm801 = vcmask 1041408
    %v802 = vsel %vm801, %v782, %v800
    %804 = vst [vmem:[#allocation12] sm:$0xf] %v802
    // Predicated region
    $region42: #{tpu_custom_call.1} parent=1 // pred_check
      _
    $region43: #{tpu_custom_call.1} parent=1 // pred_check_branch
      %806 = sbr.rel (0) target = $region45
    $region44: #{tpu_custom_call.1} parent=1 // pred_region
      %808 = vsyncadd [#allocation4], 0
      %s810 = sshll.u32 [#allocation12], 4
      %s811 = int_to_ptr.vmem [resolvable:$true] %s810
      %s812 = sshll.u32 %s5, 4
      %s813 = int_to_ptr.hbm [resolvable:$true] %s812
      %815 = dma.vmem_to_hbm [thread:$0]  %s811, 64, %s813, [#allocation4]
    $region45: #{tpu_custom_call.1} parent=1 // pred_fallthru
      _
    // Predicated region
    $region46: #{tpu_custom_call.1} parent=1 // pred_check
      _
    $region47: #{tpu_custom_call.1} parent=1 // pred_check_branch
      %817 = sbr.rel (0) target = $region49
    $region48: #{tpu_custom_call.1} parent=1 // pred_region
      %819 = dma.done [#allocation4], 64
    $region49: #{tpu_custom_call.1} parent=1 // pred_fallthru
      _
    %820 = vsyncpa [#allocation3], 1
    %821 = vsyncpa [#allocation7], 1
    %822 = vsyncpa [#allocation4], 1
    %823 = vsyncpa [#allocation5], 1
    %824 = vsyncpa [#allocation10], 1

</llo_original>
